<compile_context>
chip_gen: v7x
topology: tpu7x:2x2x1
jax: 0.10.0
libtpu: 0.0.40
codegen_flags: <defaults>
</compile_context>

<pallas_src>
import functools

import jax
import jax.numpy as jnp
from jax import lax
from jax.experimental import pallas as pl
from jax.experimental.pallas import tpu as pltpu


# ----------------------------------------------------------------------------
# helpers
# ----------------------------------------------------------------------------
def _round_up(x, m):
    return (x + m - 1) // m * m


def sinusoid_encoding_table(max_len, d_model):
    """Same math as the PyTorch sinusoid_encoding_table / position_embedding."""
    pos = jnp.arange(max_len, dtype=jnp.float32).reshape(-1, 1)
    dim = jnp.arange(d_model // 2, dtype=jnp.float32).reshape(1, -1)
    angle = pos / jnp.power(10000.0, 2.0 * dim / float(d_model))
    out = jnp.zeros((max_len, d_model), jnp.float32)
    out = out.at[:, 0::2].set(jnp.sin(angle))
    out = out.at[:, 1::2].set(jnp.cos(angle))
    return out


# ----------------------------------------------------------------------------
# LayerNorm kernel (optionally fused with residual add)
# ----------------------------------------------------------------------------
def _ln_math(x, w, b, eps, inv_h):
    # 1/hidden hoisted as a constant multiply (no per-tile divides).
    u = jnp.sum(x, axis=-1, keepdims=True) * inv_h
    xc = x - u
    var = jnp.sum(xc * xc, axis=-1, keepdims=True) * inv_h
    y = xc * lax.rsqrt(var + eps)            # rsqrt -> EUP slot
    return w * y + b


def _layernorm_kernel(x_ref, w_ref, b_ref, o_ref, *, eps, inv_h):
    x = x_ref[...].astype(jnp.float32)
    w = w_ref[...].astype(jnp.float32)
    b = b_ref[...].astype(jnp.float32)
    o_ref[...] = _ln_math(x, w, b, eps, inv_h).astype(o_ref.dtype)


def _layernorm_res_kernel(x_ref, r_ref, w_ref, b_ref, o_ref, *, eps, inv_h):
    x = x_ref[...].astype(jnp.float32) + r_ref[...].astype(jnp.float32)
    w = w_ref[...].astype(jnp.float32)
    b = b_ref[...].astype(jnp.float32)
    o_ref[...] = _ln_math(x, w, b, eps, inv_h).astype(o_ref.dtype)


def layer_norm_pallas(x, weight, bias, *, eps=1e-5, residual=None, row_tile=512):
    """LayerNorm over the last axis.  If `residual` is given, computes LN(x + residual)
    with the add fused into the kernel (one HBM pass instead of two).

    x: (..., hidden); weight/bias: (hidden,).  hidden should ideally be a multiple of
    128 for lane-dense (unmasked vst) stores — the model uses d_model = 128.
    """
    orig_shape = x.shape
    hidden = orig_shape[-1]
    dtype = x.dtype
    x2d = x.reshape(-1, hidden)
    rows = x2d.shape[0]

    # Fixed row tile, aligned to the sublane packing of the dtype (8 for f32, 16 for
    # bf16), capped by the (aligned) row count.  Many grid steps -> BlockSpec
    # double-buffering overlaps DMA with compute; "parallel" also shards the row axis
    # across both TensorCores on v7x.
    sub = 8 if dtype == jnp.float32 else 16
    row_tile = max(sub, min(row_tile, _round_up(rows, sub)))
    row_tile = (row_tile // sub) * sub

    n_tiles = pl.cdiv(rows, row_tile)          # ragged row counts handled via padding
    rows_p = n_tiles * row_tile
    pad = rows_p - rows
    if pad:
        x2d = jnp.pad(x2d, ((0, pad), (0, 0)))

    w2d = weight.reshape(1, hidden)
    b2d = bias.reshape(1, hidden)
    inv_h = float(1.0 / hidden)

    row_spec = pl.BlockSpec((row_tile, hidden), lambda i: (i, 0))
    wb_spec = pl.BlockSpec((1, hidden), lambda i: (0, 0))

    if residual is None:
        kernel = functools.partial(_layernorm_kernel, eps=eps, inv_h=inv_h)
        in_specs = [row_spec, wb_spec, wb_spec]
        args = (x2d, w2d, b2d)
        n_streams = 2
    else:
        r2d = residual.reshape(-1, hidden)
        if pad:
            r2d = jnp.pad(r2d, ((0, pad), (0, 0)))
        kernel = functools.partial(_layernorm_res_kernel, eps=eps, inv_h=inv_h)
        in_specs = [row_spec, row_spec, wb_spec, wb_spec]
        args = (x2d, r2d, w2d, b2d)
        n_streams = 3

    itemsize = jnp.dtype(dtype).itemsize
    cost = pl.CostEstimate(
        flops=int(8 * rows_p * hidden),
        transcendentals=int(rows_p),
        bytes_accessed=int(n_streams * rows_p * hidden * itemsize),
    )

    out = pl.pallas_call(
        kernel,
        out_shape=jax.ShapeDtypeStruct((rows_p, hidden), dtype),
        grid_spec=pltpu.PrefetchScalarGridSpec(
            num_scalar_prefetch=0,
            grid=(n_tiles,),
            in_specs=in_specs,
            out_specs=row_spec,
        ),
        compiler_params=pltpu.CompilerParams(
            dimension_semantics=("parallel",),
            vmem_limit_bytes=32 * 1024 * 1024,   # safe on v5e/v6e/v7x; fits 512-row tiles
        ),
        cost_estimate=cost,
    )(*args)

    if pad:
        out = out[:rows]
    return out.reshape(orig_shape)


# ----------------------------------------------------------------------------
# Linear (matmul + bias, optional ReLU) kernel
# ----------------------------------------------------------------------------
def _linear_kernel(x_ref, w_ref, b_ref, o_ref, acc_ref, *, activation):
    k = pl.program_id(2)

    @pl.when(k == 0)
    def _():
        acc_ref[...] = jnp.zeros_like(acc_ref)

    acc_ref[...] += jnp.dot(x_ref[...], w_ref[...],
                            preferred_element_type=jnp.float32)

    @pl.when(k == pl.num_programs(2) - 1)
    def _():
        y = acc_ref[...] + b_ref[...].astype(jnp.float32)
        if activation == "relu":
            y = jnp.maximum(y, 0.0)
        o_ref[...] = y.astype(o_ref.dtype)


def linear_pallas(x, w, b, *, activation=None, tm=256, tn=256, tk=512):
    """y = act(x @ w + b).  x: (..., K); w: (K, N); b: (N,)."""
    orig_shape = x.shape
    K = orig_shape[-1]
    N = w.shape[1]
    x2d = x.reshape(-1, K)
    M = x2d.shape[0]

    # Tile sizes aligned to (8, 128); shapes padded up to tile multiples (zero pad is
    # exact for matmul; padded rows/cols sliced off afterwards).
    tm = min(tm, _round_up(M, 8))
    tn = min(tn, _round_up(N, 128))
    tk = min(tk, _round_up(K, 128))
    Mp, Np, Kp = _round_up(M, tm), _round_up(N, tn), _round_up(K, tk)

    x_p = jnp.pad(x2d, ((0, Mp - M), (0, Kp - K))) if (Mp != M or Kp != K) else x2d
    w_p = jnp.pad(w, ((0, Kp - K), (0, Np - N))) if (Kp != K or Np != N) else w
    b_p = (jnp.pad(b, (0, Np - N)) if Np != N else b).reshape(1, Np)

    grid = (Mp // tm, Np // tn, Kp // tk)

    out = pl.pallas_call(
        functools.partial(_linear_kernel, activation=activation),
        out_shape=jax.ShapeDtypeStruct((Mp, Np), x.dtype),
        grid_spec=pltpu.PrefetchScalarGridSpec(
            num_scalar_prefetch=0,
            grid=grid,
            in_specs=[
                pl.BlockSpec((tm, tk), lambda i, j, k: (i, k)),
                pl.BlockSpec((tk, tn), lambda i, j, k: (k, j)),
                pl.BlockSpec((1, tn), lambda i, j, k: (0, j)),
            ],
            out_specs=pl.BlockSpec((tm, tn), lambda i, j, k: (i, j)),
            scratch_shapes=[pltpu.VMEM((tm, tn), jnp.float32)],
        ),
        compiler_params=pltpu.CompilerParams(
            dimension_semantics=("parallel", "parallel", "arbitrary"),
        ),
    )(x_p, w_p, b_p)

    out = out[:M, :N]
    return out.reshape(orig_shape[:-1] + (N,))


# ----------------------------------------------------------------------------
# Scaled-dot-product attention kernel (per batch*head grid step)
# ----------------------------------------------------------------------------
def _attn_kernel(q_ref, k_ref, v_ref, m_ref, o_ref, *, scale):
    q = q_ref[...].astype(jnp.float32)          # (nq, dk)
    k = k_ref[...].astype(jnp.float32)          # (nk, dk)
    v = v_ref[...].astype(jnp.float32)          # (nk, dv)
    m = m_ref[...]                              # (nq, nk) float; >0.5 means masked

    s = lax.dot_general(q, k, (((1,), (1,)), ((), ())),
                        preferred_element_type=jnp.float32) * scale
    masked = m > 0.5
    s = jnp.where(masked, -jnp.inf, s)
    s_max = jnp.max(s, axis=-1, keepdims=True)
    p = jnp.exp(s - s_max)
    p = p / jnp.sum(p, axis=-1, keepdims=True)
    p = jnp.where(masked, 0.0, p)
    o = jnp.dot(p, v, preferred_element_type=jnp.float32)
    o_ref[...] = o.astype(o_ref.dtype)


def attention_pallas(q, k, v, mask, *, scale):
    """q: (BH, nq, dk); k: (BH, nk, dk); v: (BH, nk, dv); mask: (BH, nq, nk) float."""
    BH, nq, dk = q.shape
    nk = k.shape[1]
    dv = v.shape[2]

    return pl.pallas_call(
        functools.partial(_attn_kernel, scale=scale),
        out_shape=jax.ShapeDtypeStruct((BH, nq, dv), q.dtype),
        grid_spec=pltpu.PrefetchScalarGridSpec(
            num_scalar_prefetch=0,
            grid=(BH,),
            in_specs=[
                pl.BlockSpec((None, nq, dk), lambda i: (i, 0, 0)),
                pl.BlockSpec((None, nk, dk), lambda i: (i, 0, 0)),
                pl.BlockSpec((None, nk, dv), lambda i: (i, 0, 0)),
                pl.BlockSpec((None, nq, nk), lambda i: (i, 0, 0)),
            ],
            out_specs=pl.BlockSpec((None, nq, dv), lambda i: (i, 0, 0)),
        ),
        compiler_params=pltpu.CompilerParams(
            dimension_semantics=("parallel",),
        ),
    )(q, k, v, mask)


# ----------------------------------------------------------------------------
# Model (forward pass of Visual_Ling_Attn, built from the kernels above)
# ----------------------------------------------------------------------------
def mha_pallas(p, queries, keys, values, h, d_k, d_v, attention_mask=None):
    b, nq, _ = queries.shape
    nk = keys.shape[1]
    q = linear_pallas(queries, p["q"]["w"], p["q"]["b"])
    k = linear_pallas(keys, p["k"]["w"], p["k"]["b"])
    v = linear_pallas(values, p["v"]["w"], p["v"]["b"])
    q = q.reshape(b, nq, h, d_k).transpose(0, 2, 1, 3).reshape(b * h, nq, d_k)
    k = k.reshape(b, nk, h, d_k).transpose(0, 2, 1, 3).reshape(b * h, nk, d_k)
    v = v.reshape(b, nk, h, d_v).transpose(0, 2, 1, 3).reshape(b * h, nk, d_v)

    if attention_mask is None:
        mask = jnp.zeros((b * h, nq, nk), jnp.float32)
    else:
        mask = jnp.broadcast_to(attention_mask, (b, h, nq, nk)).astype(jnp.float32)
        mask = mask.reshape(b * h, nq, nk)

    o = attention_pallas(q, k, v, mask, scale=1.0 / float(d_k) ** 0.5)
    o = o.reshape(b, h, nq, d_v).transpose(0, 2, 1, 3).reshape(b, nq, h * d_v)
    o = linear_pallas(o, p["o"]["w"], p["o"]["b"])
    # dropout = identity (eval mode); residual add fused into the LayerNorm kernel
    return layer_norm_pallas(o, p["ln"]["w"], p["ln"]["b"], residual=queries)


def pwff_pallas(p, x):
    y = linear_pallas(x, p["fc1"]["w"], p["fc1"]["b"], activation="relu")
    y = linear_pallas(y, p["fc2"]["w"], p["fc2"]["b"])
    return layer_norm_pallas(y, p["ln"]["w"], p["ln"]["b"], residual=x)


def inter_module_layer_pallas(p, input_1, input_2, mask_self_att, mask_enc_att, h, d_att):
    # mask_self_att is unused in the original InterModuleAttnLayer as well.
    enc_att = mha_pallas(p["att"], input_1, input_2, input_2, h, d_att, d_att,
                         attention_mask=mask_enc_att)
    return pwff_pallas(p["pwff"], enc_att)


def visual_ling_attn_forward(params, inp, inp_2, self_att_mask, enc_att_mask, cfg):
    d_model = cfg["hidden_dim"]
    h = cfg["T_num_heads"]
    d_att = d_model // h

    out = linear_pallas(inp_2, params["vis_fc"]["w"], params["vis_fc"]["b"], activation="relu")
    out = layer_norm_pallas(out, params["ln"]["w"], params["ln"]["b"])

    x = linear_pallas(inp, params["ins_fc"]["w"], params["ins_fc"]["b"], activation="relu")
    x = layer_norm_pallas(x, params["ln"]["w"], params["ln"]["b"])

    pe = sinusoid_encoding_table(x.shape[1], x.shape[2])
    x = x + pe[None, :, :]

    for lp in params["layers"]:
        out = inter_module_layer_pallas(lp, x, out, self_att_mask, enc_att_mask, h, d_att)
    return out


# ----------------------------------------------------------------------------
# Parameter construction (deterministic)
# ----------------------------------------------------------------------------
def init_params(key, cfg):
    d_model = cfg["hidden_dim"]
    h = cfg["T_num_heads"]
    d_att = d_model // h
    d_ff = cfg["T_ff_dim"]
    l_in = cfg["L_input_dim"] + cfg["num_signals"]
    v_in = cfg["VB_input_dim"]
    n_layers = cfg["T_num_layers"]

    def dense(k, fin, fout):
        kw, kb = jax.random.split(k)
        return {"w": 0.05 * jax.random.normal(kw, (fin, fout), jnp.float32),
                "b": 0.01 * jax.random.normal(kb, (fout,), jnp.float32)}

    def ln(k):
        kw, kb = jax.random.split(k)
        return {"w": 1.0 + 0.1 * jax.random.normal(kw, (d_model,), jnp.float32),
                "b": 0.1 * jax.random.normal(kb, (d_model,), jnp.float32)}

    keys = jax.random.split(key, 3 + 8 * n_layers)
    params = {
        "vis_fc": dense(keys[0], v_in, d_model),
        "ins_fc": dense(keys[1], l_in, d_model),
        "ln": ln(keys[2]),
        "layers": [],
    }
    idx = 3
    for _ in range(n_layers):
        att = {
            "q": dense(keys[idx + 0], d_model, h * d_att),
            "k": dense(keys[idx + 1], d_model, h * d_att),
            "v": dense(keys[idx + 2], d_model, h * d_att),
            "o": dense(keys[idx + 3], h * d_att, d_model),
            "ln": ln(keys[idx + 4]),
        }
        pwff = {
            "fc1": dense(keys[idx + 5], d_model, d_ff),
            "fc2": dense(keys[idx + 6], d_ff, d_model),
            "ln": ln(keys[idx + 7]),
        }
        params["layers"].append({"att": att, "pwff": pwff})
        idx += 8
    return params


# ----------------------------------------------------------------------------
# Pure-JAX reference (mirrors the PyTorch module, eval mode)
# ----------------------------------------------------------------------------
_HP = lax.Precision.HIGHEST


def _ref_layer_norm(x, w, b, eps=1e-5):
    u = jnp.mean(x, axis=-1, keepdims=True)
    s = jnp.mean((x - u) ** 2, axis=-1, keepdims=True)
    return w * (x - u) / jnp.sqrt(s + eps) + b


def _ref_linear(x, p, relu=False):
    y = jnp.dot(x, p["w"], precision=_HP) + p["b"]
    return jnp.maximum(y, 0.0) if relu else y


def _ref_mha(p, queries, keys, values, h, d_k, d_v, mask=None):
    b, nq, _ = queries.shape
    nk = keys.shape[1]
    q = _ref_linear(queries, p["q"]).reshape(b, nq, h, d_k).transpose(0, 2, 1, 3)
    k = _ref_linear(keys, p["k"]).reshape(b, nk, h, d_k).transpose(0, 2, 1, 3)
    v = _ref_linear(values, p["v"]).reshape(b, nk, h, d_v).transpose(0, 2, 1, 3)
    att = jnp.einsum("bhqd,bhkd->bhqk", q, k, precision=_HP) / (float(d_k) ** 0.5)
    if mask is not None:
        att = jnp.where(mask, -jnp.inf, att)
    att = jax.nn.softmax(att, axis=-1)
    if mask is not None:
        att = jnp.where(mask, 0.0, att)
    o = jnp.einsum("bhqk,bhkd->bhqd", att, v, precision=_HP)
    o = o.transpose(0, 2, 1, 3).reshape(b, nq, h * d_v)
    o = _ref_linear(o, p["o"])
    return _ref_layer_norm(queries + o, p["ln"]["w"], p["ln"]["b"])


def _ref_forward(params, inp, inp_2, cfg):
    h = cfg["T_num_heads"]
    d_att = cfg["hidden_dim"] // h
    out = _ref_layer_norm(_ref_linear(inp_2, params["vis_fc"], relu=True),
                          params["ln"]["w"], params["ln"]["b"])
    x = _ref_layer_norm(_ref_linear(inp, params["ins_fc"], relu=True),
                        params["ln"]["w"], params["ln"]["b"])
    x = x + sinusoid_encoding_table(x.shape[1], x.shape[2])[None]
    for lp in params["layers"]:
        enc = _ref_mha(lp["att"], x, out, out, h, d_att, d_att)
        y = _ref_linear(enc, lp["pwff"]["fc1"], relu=True)
        y = _ref_linear(y, lp["pwff"]["fc2"])
        out = _ref_layer_norm(enc + y, lp["pwff"]["ln"]["w"], lp["pwff"]["ln"]["b"])
    return out


# ----------------------------------------------------------------------------
# main
# ----------------------------------------------------------------------------
if __name__ == "__main__":
    cfg = dict(hidden_dim=128, T_num_heads=4, T_ff_dim=256, T_dropout=0.1,
               T_num_layers=2, VB_input_dim=64, L_input_dim=48, num_signals=16)
    batch, n_lang, n_vis = 2, 8, 16

    key = jax.random.PRNGKey(0)
    k_lang, k_vis, k_par = jax.random.split(key, 3)
    lang = jax.random.normal(
        k_lang, (batch, n_lang, cfg["L_input_dim"] + cfg["num_signals"]), jnp.float32)
    vis = jax.random.normal(k_vis, (batch, n_vis, cfg["VB_input_dim"]), jnp.float32)
    params = init_params(k_par, cfg)

    out = visual_ling_attn_forward(params, lang, vis, None, None, cfg)
    out = jax.block_until_ready(out)

    ref = _ref_forward(params, lang, vis, cfg)
    assert out.shape == (batch, n_lang, cfg["hidden_dim"])
    assert bool(jnp.all(jnp.isfinite(out)))
    max_err = float(jnp.max(jnp.abs(out - ref)))
    assert jnp.allclose(out, ref, atol=2e-3, rtol=2e-3), f"max abs err = {max_err}"

    print("KERNEL_OK")
</pallas_src>

<mosaic_0001>
module attributes {stable_mosaic.version = 11 : i64} {
  func.func @_linear_kernel(%arg0: i32, %arg1: i32, %arg2: i32, %arg3: memref<32x128xf32, #tpu.memory_space<vmem>>, %arg4: memref<128x128xf32, #tpu.memory_space<vmem>>, %arg5: memref<1x128xf32, #tpu.memory_space<vmem>>, %arg6: memref<32x128xf32, #tpu.memory_space<vmem>>, %arg7: memref<32x128xf32, #tpu.memory_space<vmem>>) attributes {dimension_semantics = [#tpu.dimension_semantics<parallel>, #tpu.dimension_semantics<parallel>, #tpu.dimension_semantics<arbitrary>], iteration_bounds = array<i64: 1, 1, 1>, scalar_prefetch = 0 : i64, scratch_operands = 1 : i64, tpu.core_type = #tpu.core_type<tc>, window_params = [{transform_indices = @transform_0, window_bounds = array<i64: 32, 128>}, {transform_indices = @transform_1, window_bounds = array<i64: 128, 128>}, {transform_indices = @transform_2, window_bounds = array<i64: 1, 128>}, {transform_indices = @transform_3, window_bounds = array<i64: 32, 128>}]} {
    %c0_i32 = arith.constant 0 : i32
    %0 = arith.cmpi eq, %arg2, %c0_i32 : i32
    %1 = arith.extui %0 : i1 to i32
    %c0_i32_0 = arith.constant 0 : i32
    %2 = arith.cmpi ne, %1, %c0_i32_0 : i32
    scf.if %2 {
      %cst_10 = arith.constant 0.000000e+00 : f32
      %12 = vector.broadcast %cst_10 : f32 to vector<32x128xf32>
      %c0_11 = arith.constant 0 : index
      %c0_12 = arith.constant 0 : index
      %13 = vector.load %arg7[%c0_11, %c0_12] : memref<32x128xf32, #tpu.memory_space<vmem>>, vector<32x128xf32>
      tpu.vector_store %arg7[%c0_11, %c0_12], %12 {strides = array<i32>} : memref<32x128xf32, #tpu.memory_space<vmem>>, vector<32x128xf32>,
    } else {
    }
    %c0 = arith.constant 0 : index
    %c0_1 = arith.constant 0 : index
    %3 = vector.load %arg7[%c0, %c0_1] : memref<32x128xf32, #tpu.memory_space<vmem>>, vector<32x128xf32>
    %c0_2 = arith.constant 0 : index
    %c0_3 = arith.constant 0 : index
    %4 = vector.load %arg3[%c0_2, %c0_3] : memref<32x128xf32, #tpu.memory_space<vmem>>, vector<32x128xf32>
    %c0_4 = arith.constant 0 : index
    %c0_5 = arith.constant 0 : index
    %5 = vector.load %arg4[%c0_4, %c0_5] : memref<128x128xf32, #tpu.memory_space<vmem>>, vector<128x128xf32>
    %cst = arith.constant dense<0.000000e+00> : vector<32x128xf32>
    %6 = tpu.matmul %4, %5, %cst {dimension_numbers = #tpu.dot_dimension_numbers<[1], [0], [0], [1], [0, 0, 1, 1], [], []>} : vector<32x128xf32>, vector<128x128xf32>, vector<32x128xf32> -> vector<32x128xf32>
    %7 = arith.addf %3, %6 : vector<32x128xf32>
    %c0_6 = arith.constant 0 : index
    %c0_7 = arith.constant 0 : index
    %8 = vector.load %arg7[%c0_6, %c0_7] : memref<32x128xf32, #tpu.memory_space<vmem>>, vector<32x128xf32>
    tpu.vector_store %arg7[%c0_6, %c0_7], %7 {strides = array<i32>} : memref<32x128xf32, #tpu.memory_space<vmem>>, vector<32x128xf32>,
    %c0_i32_8 = arith.constant 0 : i32
    %9 = arith.cmpi eq, %arg2, %c0_i32_8 : i32
    %10 = arith.extui %9 : i1 to i32
    %c0_i32_9 = arith.constant 0 : i32
    %11 = arith.cmpi ne, %10, %c0_i32_9 : i32
    scf.if %11 {
      %c0_10 = arith.constant 0 : index
      %c0_11 = arith.constant 0 : index
      %12 = vector.load %arg7[%c0_10, %c0_11] : memref<32x128xf32, #tpu.memory_space<vmem>>, vector<32x128xf32>
      %c0_12 = arith.constant 0 : index
      %c0_13 = arith.constant 0 : index
      %13 = vector.load %arg5[%c0_12, %c0_13] : memref<1x128xf32, #tpu.memory_space<vmem>>, vector<1x128xf32>
      %14 = vector.broadcast %13 : vector<1x128xf32> to vector<32x128xf32>
      %15 = arith.addf %12, %14 : vector<32x128xf32>
      %cst_14 = arith.constant 0.000000e+00 : f32
      %16 = vector.broadcast %cst_14 : f32 to vector<32x128xf32>
      %17 = arith.maximumf %15, %16 : vector<32x128xf32>
      %c0_15 = arith.constant 0 : index
      %c0_16 = arith.constant 0 : index
      %18 = vector.load %arg6[%c0_15, %c0_16] : memref<32x128xf32, #tpu.memory_space<vmem>>, vector<32x128xf32>
      tpu.vector_store %arg6[%c0_15, %c0_16], %17 {strides = array<i32>} : memref<32x128xf32, #tpu.memory_space<vmem>>, vector<32x128xf32>,
    } else {
    }
    return
  }
  func.func @transform_0(%arg0: i32, %arg1: i32, %arg2: i32) -> (i32, i32) {
    %c0_i32 = arith.constant 0 : i32
    return %arg0, %arg2 : i32, i32
  }
  func.func @transform_1(%arg0: i32, %arg1: i32, %arg2: i32) -> (i32, i32) {
    %c0_i32 = arith.constant 0 : i32
    return %arg2, %arg1 : i32, i32
  }
  func.func @transform_2(%arg0: i32, %arg1: i32, %arg2: i32) -> (i32, i32) {
    %c0_i32 = arith.constant 0 : i32
    %c0_i32_0 = arith.constant 0 : i32
    return %c0_i32, %arg1 : i32, i32
  }
  func.func @transform_3(%arg0: i32, %arg1: i32, %arg2: i32) -> (i32, i32) {
    %c0_i32 = arith.constant 0 : i32
    return %arg0, %arg1 : i32, i32
  }
}

</mosaic_0001>

<llo_original>
// kernel: tpu_custom_call.1
$region0: #{tpu_custom_call.1}
  #allocation0 [shape = 'u32[]', space=smem, size = 0x4, offset = 0x4, fixed_abs, tag = 'smem constant byte address 0x4 - core index']
  #allocation1 [shape = 'u32[144,128]{1,0:T(1,128)}', space=vmem, size = 0x12000, scoped, tag = 'internal scratch']
  #allocation2 [shape = 'f32[32,128]{1,0:T(8,128)}', space=vmem, size = 0x4000, scoped, tag = 'scratch operand']
  %s0 = inlined_call_operand.hbm [shape: f32[32,128], index: 0, kind: input, shape index: {}]
  %s1 = inlined_call_operand.hbm [shape: f32[128,128], index: 1, kind: input, shape index: {}]
  %s2 = inlined_call_operand.vmem [shape: f32[1,128], index: 2, kind: input, shape index: {}]
  %s3 = inlined_call_operand.hbm [shape: f32[32,128], index: 3, kind: output, shape index: {}]
  %s4 = sld [smem:[#allocation0]]
  $region38: #{tpu_custom_call.1} parent=0
    _
  %s6 = ssub.s32 1, %s4
  %s7 = scalar_select 0, %s6, %s4
  $region1: #{tpu_custom_call.1} parent=0
    #allocation3 [shape = 'u8[16384]{0}', space=vmem, size = 0x4000, scoped, tag = 'input window, operand 0, single buffered']
    #allocation4 [shape = 's32[1]{0}', space=sflag, size = 0x4, scoped, tag = 'scoped memory for tpu_custom_call.1']
    #allocation5 [shape = 's32[1]{0}', space=sflag, size = 0x4, scoped, tag = 'scoped memory for tpu_custom_call.1']
    #allocation6 [shape = 'u8[65536]{0}', space=vmem, size = 0x10000, scoped, tag = 'input window, operand 1, single buffered']
    #allocation7 [shape = 's32[1]{0}', space=sflag, size = 0x4, scoped, tag = 'scoped memory for tpu_custom_call.1']
    #allocation8 [shape = 'u8[16384]{0}', space=vmem, size = 0x4000, scoped, tag = 'output window, operand 0, single buffered']
    %8 = vsyncpa [#allocation4], 0
    %9 = vsyncpa [#allocation7], 0
    %10 = vsyncpa [#allocation5], 0
    // Predicated region
    $region2: #{tpu_custom_call.1} parent=1 // pred_check
      _
    $region3: #{tpu_custom_call.1} parent=1 // pred_check_branch
      %12 = sbr.rel (0) target = $region5
    $region4: #{tpu_custom_call.1} parent=1 // pred_region
      %s14 = ssub.s32 512, 512
      %15 = vsyncadd [#allocation4], %s14
      %s16 = sshll.u32 [#allocation3], 4
      %s17 = int_to_ptr.vmem [resolvable:$true] %s16
      %22 = dma.hbm_to_vmem [thread:$0]  %s0, 512, %s17, [#allocation4], 128, 128, 8
    $region5: #{tpu_custom_call.1} parent=1 // pred_fallthru
      _
    // Predicated region
    $region6: #{tpu_custom_call.1} parent=1 // pred_check
      _
    $region7: #{tpu_custom_call.1} parent=1 // pred_check_branch
      %24 = sbr.rel (0) target = $region9
    $region8: #{tpu_custom_call.1} parent=1 // pred_region
      %s26 = ssub.s32 2048, 2048
      %27 = vsyncadd [#allocation7], %s26
      %s28 = sshll.u32 [#allocation6], 4
      %s29 = int_to_ptr.vmem [resolvable:$true] %s28
      %34 = dma.hbm_to_vmem [thread:$0]  %s1, 2048, %s29, [#allocation7], 128, 128, 8
    $region9: #{tpu_custom_call.1} parent=1 // pred_fallthru
      _
    // Predicated region
    $region10: #{tpu_custom_call.1} parent=1 // pred_check
      _
    $region11: #{tpu_custom_call.1} parent=1 // pred_check_branch
      %36 = sbr.rel (0) target = $region13
    $region12: #{tpu_custom_call.1} parent=1 // pred_region
      _
    $region13: #{tpu_custom_call.1} parent=1 // pred_fallthru
      _
    // Predicated region
    $region14: #{tpu_custom_call.1} parent=1 // pred_check
      _
    $region15: #{tpu_custom_call.1} parent=1 // pred_check_branch
      %38 = sbr.rel (0) target = $region17
    $region16: #{tpu_custom_call.1} parent=1 // pred_region
      %39 = dma.done [#allocation4], 512
    $region17: #{tpu_custom_call.1} parent=1 // pred_fallthru
      _
    // Predicated region
    $region18: #{tpu_custom_call.1} parent=1 // pred_check
      _
    $region19: #{tpu_custom_call.1} parent=1 // pred_check_branch
      %41 = sbr.rel (0) target = $region21
    $region20: #{tpu_custom_call.1} parent=1 // pred_region
      %42 = dma.done [#allocation7], 2048
    $region21: #{tpu_custom_call.1} parent=1 // pred_fallthru
      _
    %p43 = scmp.eq.s32.totalorder 0, 0
    // Predicated region
    $region22: #{tpu_custom_call.1} parent=1 // pred_check
      %p44 = pneg %p43
    $region23: #{tpu_custom_call.1} parent=1 // pred_check_branch
      %46 = sbr.rel (%p44) target = $region25
    $region24: #{tpu_custom_call.1} parent=1 // pred_region
      %47 = vst [vmem:[#allocation2] sm:$0xff] 0.0
      %48 = vst [vmem:[#allocation2 + $0x8] sm:$0xff] 0.0
      %49 = vst [vmem:[#allocation2 + $0x10] sm:$0xff] 0.0
      %50 = vst [vmem:[#allocation2 + $0x18] sm:$0xff] 0.0
    $region25: #{tpu_custom_call.1} parent=1 // pred_fallthru
      _
    %v51 = vld [vmem:[#allocation2] sm:$0xff]
    %v52 = vld [vmem:[#allocation2 + $0x8] sm:$0xff]
    %v53 = vld [vmem:[#allocation2 + $0x10] sm:$0xff]
    %v54 = vld [vmem:[#allocation2 + $0x18] sm:$0xff]
    %v55 = vld [vmem:[#allocation3] sm:$0xff]
    %v56 = vld [vmem:[#allocation3 + $0x8] sm:$0xff]
    %v57 = vld [vmem:[#allocation3 + $0x10] sm:$0xff]
    %v58 = vld [vmem:[#allocation3 + $0x18] sm:$0xff]
    %v59 = vld [vmem:[#allocation6] sm:$0xff]
    %v60 = vld [vmem:[#allocation6 + $0x8] sm:$0xff]
    %v61 = vld [vmem:[#allocation6 + $0x10] sm:$0xff]
    %v62 = vld [vmem:[#allocation6 + $0x18] sm:$0xff]
    %v63 = vld [vmem:[#allocation6 + $0x20] sm:$0xff]
    %v64 = vld [vmem:[#allocation6 + $0x28] sm:$0xff]
    %v65 = vld [vmem:[#allocation6 + $0x30] sm:$0xff]
    %v66 = vld [vmem:[#allocation6 + $0x38] sm:$0xff]
    %v67 = vld [vmem:[#allocation6 + $0x40] sm:$0xff]
    %v68 = vld [vmem:[#allocation6 + $0x48] sm:$0xff]
    %v69 = vld [vmem:[#allocation6 + $0x50] sm:$0xff]
    %v70 = vld [vmem:[#allocation6 + $0x58] sm:$0xff]
    %v71 = vld [vmem:[#allocation6 + $0x60] sm:$0xff]
    %v72 = vld [vmem:[#allocation6 + $0x68] sm:$0xff]
    %v73 = vld [vmem:[#allocation6 + $0x70] sm:$0xff]
    %v74 = vld [vmem:[#allocation6 + $0x78] sm:$0xff]
    %75 = vmatprep.subr.mxu0 0.0
    %76 = vmatpush1.msra.mxu0 %v59
    %77 = vmatprep.subr.mxu0 0.0
    %78 = vmatpush1.msra.mxu0 %v60
    %79 = vmatprep.subr.mxu0 0.0
    %80 = vmatpush1.msra.mxu0 %v61
    %81 = vmatprep.subr.mxu0 0.0
    %82 = vmatpush1.msra.mxu0 %v62
    %83 = vmatprep.subr.mxu0 0.0
    %84 = vmatpush1.msra.mxu0 %v63
    %85 = vmatprep.subr.mxu0 0.0
    %86 = vmatpush1.msra.mxu0 %v64
    %87 = vmatprep.subr.mxu0 0.0
    %88 = vmatpush1.msra.mxu0 %v65
    %89 = vmatprep.subr.mxu0 0.0
    %90 = vmatpush1.msra.mxu0 %v66
    %91 = vmatprep.subr.mxu0 0.0
    %92 = vmatpush1.msra.mxu0 %v67
    %93 = vmatprep.subr.mxu0 0.0
    %94 = vmatpush1.msra.mxu0 %v68
    %95 = vmatprep.subr.mxu0 0.0
    %96 = vmatpush1.msra.mxu0 %v69
    %97 = vmatprep.subr.mxu0 0.0
    %98 = vmatpush1.msra.mxu0 %v70
    %99 = vmatprep.subr.mxu0 0.0
    %100 = vmatpush1.msra.mxu0 %v71
    %101 = vmatprep.subr.mxu0 0.0
    %102 = vmatpush1.msra.mxu0 %v72
    %103 = vmatprep.subr.mxu0 0.0
    %104 = vmatpush1.msra.mxu0 %v73
    %105 = vmatprep.subr.mxu0 0.0
    %106 = vmatpush1.msra.mxu0 %v74
    %107 = vmatprep.subr.mxu0 0.0
    %108 = vmatpush1.msra.mxu0 0.0
    %109 = vmatprep.subr.mxu0 0.0
    %110 = vmatpush1.msra.mxu0 0.0
    %111 = vmatprep.subr.mxu0 0.0
    %112 = vmatpush1.msra.mxu0 0.0
    %113 = vmatprep.subr.mxu0 0.0
    %114 = vmatpush1.msra.mxu0 0.0
    %115 = vmatprep.subr.mxu0 0.0
    %116 = vmatpush1.msra.mxu0 0.0
    %117 = vmatprep.subr.mxu0 0.0
    %118 = vmatpush1.msra.mxu0 0.0
    %119 = vmatprep.subr.mxu0 0.0
    %120 = vmatpush1.msra.mxu0 0.0
    %121 = vmatprep.subr.mxu0 0.0
    %122 = vmatpush1.msra.mxu0 0.0
    %123 = vmatprep.subr.mxu0 0.0
    %124 = vmatpush1.msra.mxu0 0.0
    %125 = vmatprep.subr.mxu0 0.0
    %126 = vmatpush1.msra.mxu0 0.0
    %127 = vmatprep.subr.mxu0 0.0
    %128 = vmatpush1.msra.mxu0 0.0
    %129 = vmatprep.subr.mxu0 0.0
    %130 = vmatpush1.msra.mxu0 0.0
    %131 = vmatprep.subr.mxu0 0.0
    %132 = vmatpush1.msra.mxu0 0.0
    %133 = vmatprep.subr.mxu0 0.0
    %134 = vmatpush1.msra.mxu0 0.0
    %135 = vmatprep.subr.mxu0 0.0
    %136 = vmatpush1.msra.mxu0 0.0
    %137 = vmatprep.subr.mxu0 0.0
    %138 = vmatpush1.msra.mxu0 0.0
    %139 = vmatprep.mubr.f32.mxu0 0.0
    %140 = vmatmul.mubr.f32.gmra.mrb[0].mxu0 %v55
    %v141 = vpop.f32.mrb[0].mxu0
    %v142 = vadd.f32 0.0, %v141
    %v143 = vpop.f32.mrb[0].mxu0
    %144 = vmatprep.mubr.f32.mxu0 0.0
    %145 = vmatmul.mubr.f32.gmra.mrb[0].mxu0 %v56
    %v146 = vpop.f32.mrb[0].mxu0
    %v147 = vadd.f32 0.0, %v146
    %v148 = vpop.f32.mrb[0].mxu0
    %149 = vmatprep.mubr.f32.mxu0 0.0
    %150 = vmatmul.mubr.f32.gmra.mrb[0].mxu0 %v57
    %v151 = vpop.f32.mrb[0].mxu0
    %v152 = vadd.f32 0.0, %v151
    %v153 = vpop.f32.mrb[0].mxu0
    %154 = vmatprep.mubr.f32.mxu0 0.0
    %155 = vmatmul.mubr.f32.gmra.mrb[0].mxu0 %v58
    %v156 = vpop.f32.mrb[0].mxu0
    %v157 = vadd.f32 0.0, %v156
    %v158 = vpop.f32.mrb[0].mxu0
    %159 = vdwg.mxu0
    %v160 = vadd.f32 %v51, %v142
    %v161 = vadd.f32 %v52, %v147
    %v162 = vadd.f32 %v53, %v152
    %v163 = vadd.f32 %v54, %v157
    %164 = vst [vmem:[#allocation2] sm:$0xff] %v160
    %165 = vst [vmem:[#allocation2 + $0x8] sm:$0xff] %v161
    %166 = vst [vmem:[#allocation2 + $0x10] sm:$0xff] %v162
    %167 = vst [vmem:[#allocation2 + $0x18] sm:$0xff] %v163
    // Predicated region
    $region26: #{tpu_custom_call.1} parent=1 // pred_check
      %p168 = pneg %p43
    $region27: #{tpu_custom_call.1} parent=1 // pred_check_branch
      %170 = sbr.rel (%p168) target = $region29
    $region28: #{tpu_custom_call.1} parent=1 // pred_region
      %v171 = vld [vmem:[#allocation2] sm:$0xff]
      %v172 = vld [vmem:[#allocation2 + $0x8] sm:$0xff]
      %v173 = vld [vmem:[#allocation2 + $0x10] sm:$0xff]
      %v174 = vld [vmem:[#allocation2 + $0x18] sm:$0xff]
      %v175 = vld [vmem:[%s2] sm:$0x1]
      %v177 = vlaneseq
      %v178 = vshrl.u32 %v177, 7
      %v179 = vsub.s32 0, %v178
      %v180 = vrot.slane %v175, %v179
      %v182 = vadd.f32 %v171, %v180
      %v183 = vadd.f32 %v172, %v180
      %v184 = vadd.f32 %v173, %v180
      %v185 = vadd.f32 %v174, %v180
      %v186 = vmax.f32 %v182, 0.0
      %v187 = vmax.f32 %v183, 0.0
      %v188 = vmax.f32 %v184, 0.0
      %v189 = vmax.f32 %v185, 0.0
      %190 = vst [vmem:[#allocation8] sm:$0xff] %v186
      %191 = vst [vmem:[#allocation8 + $0x8] sm:$0xff] %v187
      %192 = vst [vmem:[#allocation8 + $0x10] sm:$0xff] %v188
      %193 = vst [vmem:[#allocation8 + $0x18] sm:$0xff] %v189
    $region29: #{tpu_custom_call.1} parent=1 // pred_fallthru
      _
    // Predicated region
    $region30: #{tpu_custom_call.1} parent=1 // pred_check
      _
    $region31: #{tpu_custom_call.1} parent=1 // pred_check_branch
      %195 = sbr.rel (0) target = $region33
    $region32: #{tpu_custom_call.1} parent=1 // pred_region
      %s197 = ssub.s32 512, 512
      %198 = vsyncadd [#allocation5], %s197
      %s199 = sshll.u32 [#allocation8], 4
      %s200 = int_to_ptr.vmem [resolvable:$true] %s199
      %205 = dma.vmem_to_hbm [thread:$0]  %s200, 512, %s3, [#allocation5], 128, 128, 8
    $region33: #{tpu_custom_call.1} parent=1 // pred_fallthru
      _
    // Predicated region
    $region34: #{tpu_custom_call.1} parent=1 // pred_check
      _
    $region35: #{tpu_custom_call.1} parent=1 // pred_check_branch
      %207 = sbr.rel (0) target = $region37
    $region36: #{tpu_custom_call.1} parent=1 // pred_region
      %208 = dma.done [#allocation5], 512
    $region37: #{tpu_custom_call.1} parent=1 // pred_fallthru
      _
    %209 = vsyncpa [#allocation4], 1
    %210 = vsyncpa [#allocation7], 1
    %211 = vsyncpa [#allocation5], 1

</llo_original>
